<compile_context>
chip_gen: v5e
topology: v5e:2x2
jax: 0.10.0
libtpu: 0.0.40
codegen_flags: <defaults>
</compile_context>

<pallas_src>
import functools

import jax
import jax.numpy as jnp
from jax.experimental import pallas as pl
from jax.experimental.pallas import tpu as pltpu

BN_EPS = 1e-5


def _mlp_kernel(x_ref, w1_ref, w2_ref, w3_ref, w4_ref, bias_ref, o_ref, *,
                hidden, out_dim):
    # Compute dtype for the MXU (bf16 by default); accumulation is always f32.
    cdt = w1_ref.dtype

    # Static slices of the packed bias slab (one resident DMA for all four bias rows).
    b1 = bias_ref[0:1, 0:hidden]
    b2 = bias_ref[1:2, 0:hidden]
    b3 = bias_ref[2:3, 0:hidden]
    b4 = bias_ref[3:4, 0:out_dim]

    # BN is already folded into (w, b); Dropout is identity at inference.
    h = jnp.dot(x_ref[...].astype(cdt), w1_ref[...],
                preferred_element_type=jnp.float32) + b1
    h = jnp.maximum(h, 0.0)
    h = jnp.dot(h.astype(cdt), w2_ref[...],
                preferred_element_type=jnp.float32) + b2
    h = jnp.maximum(h, 0.0)
    h = jnp.dot(h.astype(cdt), w3_ref[...],
                preferred_element_type=jnp.float32) + b3
    h = jnp.maximum(h, 0.0)
    out = jnp.dot(h.astype(cdt), w4_ref[...],
                  preferred_element_type=jnp.float32) + b4
    o_ref[...] = out.astype(o_ref.dtype)


def _fold_bn(w, b, gamma, beta, mean, var):
    """Fold eval-mode BatchNorm1d into the preceding Linear."""
    scale = gamma * jax.lax.rsqrt(var + BN_EPS)         # [1, D_out]
    return w * scale, (b - mean) * scale + beta


def fold_and_pack(params, *, use_bf16=True):
    """One-time preprocessing (do NOT repay per forward call):
    fold eval-mode BN into the Linears, cast weights to the MXU compute dtype, and
    pack the four bias rows into a single (8, L) lane-aligned slab (one DMA)."""
    hidden = params["w1"].shape[1]
    output_dim = params["w4"].shape[1]

    w1, b1 = _fold_bn(params["w1"], params["b1"], params["g1"], params["beta1"],
                      params["m1"], params["v1"])
    w2, b2 = _fold_bn(params["w2"], params["b2"], params["g2"], params["beta2"],
                      params["m2"], params["v2"])
    w3, b3 = _fold_bn(params["w3"], params["b3"], params["g3"], params["beta3"],
                      params["m3"], params["v3"])
    w4, b4 = params["w4"], params["b4"]

    L = pl.cdiv(max(hidden, output_dim), 128) * 128     # lane-aligned bias slab width
    bias_pack = jnp.zeros((8, L), jnp.float32)
    bias_pack = bias_pack.at[0, :hidden].set(b1[0])
    bias_pack = bias_pack.at[1, :hidden].set(b2[0])
    bias_pack = bias_pack.at[2, :hidden].set(b3[0])
    bias_pack = bias_pack.at[3, :output_dim].set(b4[0])

    cdt = jnp.bfloat16 if use_bf16 else jnp.float32
    return dict(w1=w1.astype(cdt), w2=w2.astype(cdt), w3=w3.astype(cdt),
                w4=w4.astype(cdt), bias=bias_pack)


def improved_nn_forward(x, packed, *, block_b=1024):
    """x: [B, input_dim] float32. packed: output of fold_and_pack(params)."""
    B, d_in = x.shape
    hidden = packed["w1"].shape[1]
    out_dim = packed["w4"].shape[1]

    # ---- Batch tiling: row tiles, weights/biases VMEM-resident across the batch loop ----
    if B <= block_b:
        tb, b_pad, x_in = B, B, x
    else:
        tb = block_b
        b_pad = pl.cdiv(B, tb) * tb
        x_in = x if b_pad == B else jnp.pad(x, ((0, b_pad - B), (0, 0)))

    kernel = functools.partial(_mlp_kernel, hidden=hidden, out_dim=out_dim)

    out = pl.pallas_call(
        kernel,
        out_shape=jax.ShapeDtypeStruct((b_pad, out_dim), jnp.float32),
        grid=(b_pad // tb,),
        in_specs=[
            pl.BlockSpec((tb, d_in), lambda i: (i, 0)),          # x: tiled over rows
            pl.BlockSpec(packed["w1"].shape, lambda i: (0, 0)),  # weights: resident
            pl.BlockSpec(packed["w2"].shape, lambda i: (0, 0)),
            pl.BlockSpec(packed["w3"].shape, lambda i: (0, 0)),
            pl.BlockSpec(packed["w4"].shape, lambda i: (0, 0)),
            pl.BlockSpec(packed["bias"].shape, lambda i: (0, 0)),  # packed biases: resident
        ],
        out_specs=pl.BlockSpec((tb, out_dim), lambda i: (i, 0)),  # true-width output
        compiler_params=pltpu.CompilerParams(
            dimension_semantics=("parallel",),  # shard batch tiles across TCs (v7x)
        ),
    )(x_in, packed["w1"], packed["w2"], packed["w3"], packed["w4"], packed["bias"])

    return out if b_pad == B else out[:B]


def init_params(key, input_dim, hidden_dim, output_dim):
    """Deterministic synthetic parameter init (PyTorch nn.Linear-style uniform)."""
    keys = jax.random.split(key, 16)

    def linear(kw, kb, fan_in, fan_out):
        bound = 1.0 / jnp.sqrt(fan_in)
        w = jax.random.uniform(kw, (fan_in, fan_out), jnp.float32, -bound, bound)
        b = jax.random.uniform(kb, (1, fan_out), jnp.float32, -bound, bound)
        return w, b

    w1, b1 = linear(keys[0], keys[1], input_dim, hidden_dim)
    w2, b2 = linear(keys[2], keys[3], hidden_dim, hidden_dim)
    w3, b3 = linear(keys[4], keys[5], hidden_dim, hidden_dim)
    w4, b4 = linear(keys[6], keys[7], hidden_dim, output_dim)

    def bn(kg, kb, km, kv, dim):
        gamma = 1.0 + 0.1 * jax.random.normal(kg, (1, dim), jnp.float32)
        beta = 0.1 * jax.random.normal(kb, (1, dim), jnp.float32)
        mean = 0.05 * jax.random.normal(km, (1, dim), jnp.float32)
        var = 1.0 + 0.1 * jax.random.uniform(kv, (1, dim), jnp.float32)
        return gamma, beta, mean, var

    g1, beta1, m1, v1 = bn(keys[8], keys[9], keys[10], keys[11], hidden_dim)
    g2, beta2, m2, v2 = bn(keys[12], keys[13], keys[14], keys[15], hidden_dim)
    k2 = jax.random.split(keys[15], 4)
    g3, beta3, m3, v3 = bn(k2[0], k2[1], k2[2], k2[3], hidden_dim)

    return dict(
        w1=w1, b1=b1, g1=g1, beta1=beta1, m1=m1, v1=v1,
        w2=w2, b2=b2, g2=g2, beta2=beta2, m2=m2, v2=v2,
        w3=w3, b3=b3, g3=g3, beta3=beta3, m3=m3, v3=v3,
        w4=w4, b4=b4,
    )


def reference_forward_f32(x, p):
    """Pure-JAX f32 reference with the original (unfolded) eval-mode semantics."""
    def block(h, w, b, g, be, m, v):
        h = h @ w + b
        h = (h - m) / jnp.sqrt(v + BN_EPS) * g + be
        return jnp.maximum(h, 0.0)

    h = block(x, p["w1"], p["b1"], p["g1"], p["beta1"], p["m1"], p["v1"])
    h = block(h, p["w2"], p["b2"], p["g2"], p["beta2"], p["m2"], p["v2"])
    h = block(h, p["w3"], p["b3"], p["g3"], p["beta3"], p["m3"], p["v3"])
    return h @ p["w4"] + p["b4"]


def reference_forward_matched(x, p, compute_dtype=jnp.bfloat16):
    """Reference with the kernel's exact numerics (BN folded, bf16 matmuls, f32 accum)."""
    def block(h, w, b, g, be, m, v):
        wf, bf = _fold_bn(w, b, g, be, m, v)
        h = jnp.dot(h.astype(compute_dtype), wf.astype(compute_dtype),
                    preferred_element_type=jnp.float32) + bf
        return jnp.maximum(h, 0.0)

    h = block(x, p["w1"], p["b1"], p["g1"], p["beta1"], p["m1"], p["v1"])
    h = block(h, p["w2"], p["b2"], p["g2"], p["beta2"], p["m2"], p["v2"])
    h = block(h, p["w3"], p["b3"], p["g3"], p["beta3"], p["m3"], p["v3"])
    return jnp.dot(h.astype(compute_dtype), p["w4"].astype(compute_dtype),
                   preferred_element_type=jnp.float32) + p["b4"]


if __name__ == "__main__":
    input_dim, hidden_dim, output_dim = 16, 128, 8
    batch = 8

    key = jax.random.PRNGKey(0)
    kx, kp = jax.random.split(key)
    x = jax.random.normal(kx, (batch, input_dim), jnp.float32)
    params = init_params(kp, input_dim, hidden_dim, output_dim)

    packed = fold_and_pack(params)                      # one-time fold/cast/pack
    out = jax.jit(improved_nn_forward)(x, packed)
    out = jax.block_until_ready(out)
    assert out.shape == (batch, output_dim)

    # Tight check vs a reference with identical numerics (bf16 matmuls, f32 accum).
    ref_matched = reference_forward_matched(x, params)
    err_m = jnp.max(jnp.abs(out - ref_matched))
    assert jnp.allclose(out, ref_matched, atol=2e-3, rtol=2e-3), f"matched max abs err {err_m}"

    # Loose check vs the full-f32 eval-mode reference (bf16 matmul rounding expected).
    ref_f32 = reference_forward_f32(x, params)
    err_f = jnp.max(jnp.abs(out - ref_f32))
    assert jnp.allclose(out, ref_f32, atol=5e-2, rtol=5e-2), f"f32 max abs err {err_f}"

    print("KERNEL_OK")
</pallas_src>

<mosaic_0001>
module attributes {stable_mosaic.version = 11 : i64} {
  func.func @_mlp_kernel(%arg0: i32, %arg1: memref<8x16xf32, #tpu.memory_space<vmem>>, %arg2: memref<16x128xbf16, #tpu.memory_space<vmem>>, %arg3: memref<128x128xbf16, #tpu.memory_space<vmem>>, %arg4: memref<128x128xbf16, #tpu.memory_space<vmem>>, %arg5: memref<128x8xbf16, #tpu.memory_space<vmem>>, %arg6: memref<8x128xf32, #tpu.memory_space<vmem>>, %arg7: memref<8x8xf32, #tpu.memory_space<vmem>>) attributes {dimension_semantics = [#tpu.dimension_semantics<parallel>], iteration_bounds = array<i64: 1>, scalar_prefetch = 0 : i64, scratch_operands = 0 : i64, tpu.core_type = #tpu.core_type<tc>, window_params = [{transform_indices = @transform_0, window_bounds = array<i64: 8, 16>}, {pipeline_mode = #tpu.pipeline_mode<synchronous>, transform_indices = @transform_1, window_bounds = array<i64: 16, 128>}, {pipeline_mode = #tpu.pipeline_mode<synchronous>, transform_indices = @transform_2, window_bounds = array<i64: 128, 128>}, {pipeline_mode = #tpu.pipeline_mode<synchronous>, transform_indices = @transform_3, window_bounds = array<i64: 128, 128>}, {pipeline_mode = #tpu.pipeline_mode<synchronous>, transform_indices = @transform_4, window_bounds = array<i64: 128, 8>}, {pipeline_mode = #tpu.pipeline_mode<synchronous>, transform_indices = @transform_5, window_bounds = array<i64: 8, 128>}, {transform_indices = @transform_6, window_bounds = array<i64: 8, 8>}]} {
    %c0 = arith.constant 0 : index
    %c0_0 = arith.constant 0 : index
    %0 = vector.load %arg6[%c0, %c0_0] : memref<8x128xf32, #tpu.memory_space<vmem>>, vector<1x128xf32>
    %c1 = arith.constant 1 : index
    %c0_1 = arith.constant 0 : index
    %1 = vector.load %arg6[%c1, %c0_1] : memref<8x128xf32, #tpu.memory_space<vmem>>, vector<1x128xf32>
    %c2 = arith.constant 2 : index
    %c0_2 = arith.constant 0 : index
    %2 = vector.load %arg6[%c2, %c0_2] : memref<8x128xf32, #tpu.memory_space<vmem>>, vector<1x128xf32>
    %c3 = arith.constant 3 : index
    %c0_3 = arith.constant 0 : index
    %3 = vector.load %arg6[%c3, %c0_3] : memref<8x128xf32, #tpu.memory_space<vmem>>, vector<1x8xf32>
    %c0_4 = arith.constant 0 : index
    %c0_5 = arith.constant 0 : index
    %4 = vector.load %arg1[%c0_4, %c0_5] : memref<8x16xf32, #tpu.memory_space<vmem>>, vector<8x16xf32>
    %5 = arith.truncf %4 : vector<8x16xf32> to vector<8x16xbf16>
    %c0_6 = arith.constant 0 : index
    %c0_7 = arith.constant 0 : index
    %6 = vector.load %arg2[%c0_6, %c0_7] : memref<16x128xbf16, #tpu.memory_space<vmem>>, vector<16x128xbf16>
    %cst = arith.constant dense<0.000000e+00> : vector<8x128xf32>
    %7 = tpu.matmul %5, %6, %cst {dimension_numbers = #tpu.dot_dimension_numbers<[1], [0], [0], [1], [0, 0, 1, 1], [], []>} : vector<8x16xbf16>, vector<16x128xbf16>, vector<8x128xf32> -> vector<8x128xf32>
    %8 = vector.broadcast %0 : vector<1x128xf32> to vector<8x128xf32>
    %9 = arith.addf %7, %8 : vector<8x128xf32>
    %cst_8 = arith.constant 0.000000e+00 : f32
    %10 = vector.broadcast %cst_8 : f32 to vector<8x128xf32>
    %11 = arith.maximumf %9, %10 : vector<8x128xf32>
    %12 = arith.truncf %11 : vector<8x128xf32> to vector<8x128xbf16>
    %c0_9 = arith.constant 0 : index
    %c0_10 = arith.constant 0 : index
    %13 = vector.load %arg3[%c0_9, %c0_10] : memref<128x128xbf16, #tpu.memory_space<vmem>>, vector<128x128xbf16>
    %cst_11 = arith.constant dense<0.000000e+00> : vector<8x128xf32>
    %14 = tpu.matmul %12, %13, %cst_11 {dimension_numbers = #tpu.dot_dimension_numbers<[1], [0], [0], [1], [0, 0, 1, 1], [], []>} : vector<8x128xbf16>, vector<128x128xbf16>, vector<8x128xf32> -> vector<8x128xf32>
    %15 = vector.broadcast %1 : vector<1x128xf32> to vector<8x128xf32>
    %16 = arith.addf %14, %15 : vector<8x128xf32>
    %cst_12 = arith.constant 0.000000e+00 : f32
    %17 = vector.broadcast %cst_12 : f32 to vector<8x128xf32>
    %18 = arith.maximumf %16, %17 : vector<8x128xf32>
    %19 = arith.truncf %18 : vector<8x128xf32> to vector<8x128xbf16>
    %c0_13 = arith.constant 0 : index
    %c0_14 = arith.constant 0 : index
    %20 = vector.load %arg4[%c0_13, %c0_14] : memref<128x128xbf16, #tpu.memory_space<vmem>>, vector<128x128xbf16>
    %cst_15 = arith.constant dense<0.000000e+00> : vector<8x128xf32>
    %21 = tpu.matmul %19, %20, %cst_15 {dimension_numbers = #tpu.dot_dimension_numbers<[1], [0], [0], [1], [0, 0, 1, 1], [], []>} : vector<8x128xbf16>, vector<128x128xbf16>, vector<8x128xf32> -> vector<8x128xf32>
    %22 = vector.broadcast %2 : vector<1x128xf32> to vector<8x128xf32>
    %23 = arith.addf %21, %22 : vector<8x128xf32>
    %cst_16 = arith.constant 0.000000e+00 : f32
    %24 = vector.broadcast %cst_16 : f32 to vector<8x128xf32>
    %25 = arith.maximumf %23, %24 : vector<8x128xf32>
    %26 = arith.truncf %25 : vector<8x128xf32> to vector<8x128xbf16>
    %c0_17 = arith.constant 0 : index
    %c0_18 = arith.constant 0 : index
    %27 = vector.load %arg5[%c0_17, %c0_18] : memref<128x8xbf16, #tpu.memory_space<vmem>>, vector<128x8xbf16>
    %cst_19 = arith.constant dense<0.000000e+00> : vector<8x8xf32>
    %28 = tpu.matmul %26, %27, %cst_19 {dimension_numbers = #tpu.dot_dimension_numbers<[1], [0], [0], [1], [0, 0, 1, 1], [], []>} : vector<8x128xbf16>, vector<128x8xbf16>, vector<8x8xf32> -> vector<8x8xf32>
    %29 = vector.broadcast %3 : vector<1x8xf32> to vector<8x8xf32>
    %30 = arith.addf %28, %29 : vector<8x8xf32>
    %c0_20 = arith.constant 0 : index
    %c0_21 = arith.constant 0 : index
    %31 = vector.load %arg7[%c0_20, %c0_21] : memref<8x8xf32, #tpu.memory_space<vmem>>, vector<8x8xf32>
    tpu.vector_store %arg7[%c0_20, %c0_21], %30 {strides = array<i32>} : memref<8x8xf32, #tpu.memory_space<vmem>>, vector<8x8xf32>,
    return
  }
  func.func @transform_0(%arg0: i32) -> (i32, i32) {
    %c0_i32 = arith.constant 0 : i32
    %c0_i32_0 = arith.constant 0 : i32
    return %arg0, %c0_i32 : i32, i32
  }
  func.func @transform_1(%arg0: i32) -> (i32, i32) {
    %c0_i32 = arith.constant 0 : i32
    %c0_i32_0 = arith.constant 0 : i32
    %c0_i32_1 = arith.constant 0 : i32
    return %c0_i32, %c0_i32_0 : i32, i32
  }
  func.func @transform_2(%arg0: i32) -> (i32, i32) {
    %c0_i32 = arith.constant 0 : i32
    %c0_i32_0 = arith.constant 0 : i32
    %c0_i32_1 = arith.constant 0 : i32
    return %c0_i32, %c0_i32_0 : i32, i32
  }
  func.func @transform_3(%arg0: i32) -> (i32, i32) {
    %c0_i32 = arith.constant 0 : i32
    %c0_i32_0 = arith.constant 0 : i32
    %c0_i32_1 = arith.constant 0 : i32
    return %c0_i32, %c0_i32_0 : i32, i32
  }
  func.func @transform_4(%arg0: i32) -> (i32, i32) {
    %c0_i32 = arith.constant 0 : i32
    %c0_i32_0 = arith.constant 0 : i32
    %c0_i32_1 = arith.constant 0 : i32
    return %c0_i32, %c0_i32_0 : i32, i32
  }
  func.func @transform_5(%arg0: i32) -> (i32, i32) {
    %c0_i32 = arith.constant 0 : i32
    %c0_i32_0 = arith.constant 0 : i32
    %c0_i32_1 = arith.constant 0 : i32
    return %c0_i32, %c0_i32_0 : i32, i32
  }
  func.func @transform_6(%arg0: i32) -> (i32, i32) {
    %c0_i32 = arith.constant 0 : i32
    %c0_i32_0 = arith.constant 0 : i32
    return %arg0, %c0_i32 : i32, i32
  }
}

</mosaic_0001>

<llo_original>
// kernel: improved_nn_forward.1
$region0: #{improved_nn_forward.1}
  #allocation0 [shape = 'u32[]', space=smem, size = 0x4, offset = 0x4, fixed_abs, tag = 'smem constant byte address 0x4 - core index']
  #allocation1 [shape = 'u32[72,128]{1,0:T(1,128)}', space=vmem, size = 0x9000, scoped, tag = 'internal scratch']
  %s0 = inlined_call_operand.hbm [shape: f32[8,16], index: 0, kind: input, shape index: {}]
  %s1 = inlined_call_operand.hbm [shape: bf16[16,128], index: 1, kind: input, shape index: {}]
  %s2 = inlined_call_operand.vmem [shape: bf16[128,128], index: 2, kind: input, shape index: {}]
  %s3 = inlined_call_operand.hbm [shape: bf16[128,128], index: 3, kind: input, shape index: {}]
  %s4 = inlined_call_operand.vmem [shape: bf16[128,8], index: 4, kind: input, shape index: {}]
  %s5 = inlined_call_operand.hbm [shape: f32[8,128], index: 5, kind: input, shape index: {}]
  %s6 = inlined_call_operand.hbm [shape: f32[8,8], index: 6, kind: output, shape index: {}]
  %s7 = sld [smem:[#allocation0]]
  $region50: #{improved_nn_forward.1} parent=0
    _
  %s9 = ssub.s32 1, %s7
  %s10 = scalar_select 0, %s9, %s7
  $region1: #{improved_nn_forward.1} parent=0
    #allocation2 [shape = 'u8[4096]{0}', space=vmem, size = 0x1000, scoped, tag = 'input window, operand 0, single buffered']
    #allocation3 [shape = 's32[1]{0}', space=sflag, size = 0x4, scoped, tag = 'scoped memory for improved_nn_forward.1']
    #allocation4 [shape = 's32[1]{0}', space=sflag, size = 0x4, scoped, tag = 'scoped memory for improved_nn_forward.1']
    #allocation5 [shape = 'u8[4096]{0}', space=vmem, size = 0x1000, scoped, tag = 'input window, operand 1, single buffered']
    #allocation6 [shape = 's32[1]{0}', space=sflag, size = 0x4, scoped, tag = 'scoped memory for improved_nn_forward.1']
    #allocation7 [shape = 'u8[32768]{0}', space=vmem, size = 0x8000, scoped, tag = 'input window, operand 3, single buffered']
    #allocation8 [shape = 'u8[4096]{0}', space=vmem, size = 0x1000, scoped, tag = 'input window, operand 5, single buffered']
    #allocation9 [shape = 's32[1]{0}', space=sflag, size = 0x4, scoped, tag = 'scoped memory for improved_nn_forward.1']
    #allocation10 [shape = 'u8[4096]{0}', space=vmem, size = 0x1000, scoped, tag = 'output window, operand 0, single buffered']
    %11 = vsyncpa [#allocation3], 0
    %12 = vsyncpa [#allocation6], 0
    %13 = vsyncpa [#allocation9], 0
    %14 = vsyncpa [#allocation4], 0
    // Predicated region
    $region2: #{improved_nn_forward.1} parent=1 // pred_check
      _
    $region3: #{improved_nn_forward.1} parent=1 // pred_check_branch
      %16 = sbr.rel (0) target = $region5
    $region4: #{improved_nn_forward.1} parent=1 // pred_region
      %18 = vsyncadd [#allocation3], 0
      %s20 = sshll.u32 %s0, 4
      %s21 = int_to_ptr.hbm [resolvable:$true] %s20
      %s22 = sshll.u32 [#allocation2], 4
      %s23 = int_to_ptr.vmem [resolvable:$true] %s22
      %25 = dma.hbm_to_vmem [thread:$0]  %s21, 128, %s23, [#allocation3]
    $region5: #{improved_nn_forward.1} parent=1 // pred_fallthru
      _
    // Predicated region
    $region6: #{improved_nn_forward.1} parent=1 // pred_check
      _
    $region7: #{improved_nn_forward.1} parent=1 // pred_check_branch
      %27 = sbr.rel (0) target = $region9
    $region8: #{improved_nn_forward.1} parent=1 // pred_region
      %29 = vsyncadd [#allocation6], 0
      %s30 = sshll.u32 %s1, 4
      %s31 = int_to_ptr.hbm [resolvable:$true] %s30
      %s32 = sshll.u32 [#allocation5], 4
      %s33 = int_to_ptr.vmem [resolvable:$true] %s32
      %38 = dma.hbm_to_vmem [thread:$0]  %s31, 128, %s33, [#allocation6], 64, 64, 4
    $region9: #{improved_nn_forward.1} parent=1 // pred_fallthru
      _
    // Predicated region
    $region10: #{improved_nn_forward.1} parent=1 // pred_check
      _
    $region11: #{improved_nn_forward.1} parent=1 // pred_check_branch
      %40 = sbr.rel (0) target = $region13
    $region12: #{improved_nn_forward.1} parent=1 // pred_region
      _
    $region13: #{improved_nn_forward.1} parent=1 // pred_fallthru
      _
    // Predicated region
    $region14: #{improved_nn_forward.1} parent=1 // pred_check
      _
    $region15: #{improved_nn_forward.1} parent=1 // pred_check_branch
      %42 = sbr.rel (0) target = $region17
    $region16: #{improved_nn_forward.1} parent=1 // pred_region
      %44 = vsyncadd [#allocation6], 0
      %s45 = sshll.u32 %s3, 4
      %s46 = int_to_ptr.hbm [resolvable:$true] %s45
      %s47 = sshll.u32 [#allocation7], 4
      %s48 = int_to_ptr.vmem [resolvable:$true] %s47
      %53 = dma.hbm_to_vmem [thread:$0]  %s46, 1024, %s48, [#allocation6], 64, 64, 4
    $region17: #{improved_nn_forward.1} parent=1 // pred_fallthru
      _
    // Predicated region
    $region18: #{improved_nn_forward.1} parent=1 // pred_check
      _
    $region19: #{improved_nn_forward.1} parent=1 // pred_check_branch
      %55 = sbr.rel (0) target = $region21
    $region20: #{improved_nn_forward.1} parent=1 // pred_region
      _
    $region21: #{improved_nn_forward.1} parent=1 // pred_fallthru
      _
    // Predicated region
    $region22: #{improved_nn_forward.1} parent=1 // pred_check
      _
    $region23: #{improved_nn_forward.1} parent=1 // pred_check_branch
      %57 = sbr.rel (0) target = $region25
    $region24: #{improved_nn_forward.1} parent=1 // pred_region
      %59 = vsyncadd [#allocation9], 0
      %s61 = sshll.u32 %s5, 4
      %s62 = int_to_ptr.hbm [resolvable:$true] %s61
      %s63 = sshll.u32 [#allocation8], 4
      %s64 = int_to_ptr.vmem [resolvable:$true] %s63
      %66 = dma.hbm_to_vmem [thread:$0]  %s62, 128, %s64, [#allocation9]
    $region25: #{improved_nn_forward.1} parent=1 // pred_fallthru
      _
    // Predicated region
    $region26: #{improved_nn_forward.1} parent=1 // pred_check
      _
    $region27: #{improved_nn_forward.1} parent=1 // pred_check_branch
      %68 = sbr.rel (0) target = $region29
    $region28: #{improved_nn_forward.1} parent=1 // pred_region
      %70 = dma.done [#allocation3], 128
    $region29: #{improved_nn_forward.1} parent=1 // pred_fallthru
      _
    // Predicated region
    $region30: #{improved_nn_forward.1} parent=1 // pred_check
      _
    $region31: #{improved_nn_forward.1} parent=1 // pred_check_branch
      %72 = sbr.rel (0) target = $region33
    $region32: #{improved_nn_forward.1} parent=1 // pred_region
      %74 = dma.done [#allocation6], 128
    $region33: #{improved_nn_forward.1} parent=1 // pred_fallthru
      _
    // Predicated region
    $region34: #{improved_nn_forward.1} parent=1 // pred_check
      _
    $region35: #{improved_nn_forward.1} parent=1 // pred_check_branch
      %76 = sbr.rel (0) target = $region37
    $region36: #{improved_nn_forward.1} parent=1 // pred_region
      %78 = dma.done [#allocation6], 1024
    $region37: #{improved_nn_forward.1} parent=1 // pred_fallthru
      _
    // Predicated region
    $region38: #{improved_nn_forward.1} parent=1 // pred_check
      _
    $region39: #{improved_nn_forward.1} parent=1 // pred_check_branch
      %80 = sbr.rel (0) target = $region41
    $region40: #{improved_nn_forward.1} parent=1 // pred_region
      %82 = dma.done [#allocation9], 128
    $region41: #{improved_nn_forward.1} parent=1 // pred_fallthru
      _
    %v84 = vld [vmem:[#allocation8] sm:$0x1]
    %v85 = vld [vmem:[#allocation8 + $0x1] sm:$0x1]
    %v86 = vld [vmem:[#allocation8 + $0x2] sm:$0x1]
    %v87 = vld [vmem:[#allocation8 + $0x3] sm:$0x1]
    %v88 = vld [vmem:[#allocation2] sm:$0xff]
    %v89 = vpack.c.bf16 %v88, %v88
    %v90 = vld [vmem:[#allocation5] sm:$0xf]
    %v91 = vld [vmem:[#allocation5 + $0x4] sm:$0xf]
    %v92 = vperm.slane %v84, 0
    %v95 = vunpack.c.l.b16 %v90
    %v96 = vunpack.c.l.b16 %v91
    %v97 = vpack.c.b16 %v96, %v95
    %vm99 = vcmask 130048
    %v101 = vsel %vm99, %v89, 0
    %103 = vmatpush.bf16.msra.mxu0 0
    %104 = vmatpush.bf16.msra.mxu0 0
    %105 = vmatpush.bf16.msra.mxu0 0
    %106 = vmatpush.bf16.msra.mxu0 0
    %107 = vmatpush.bf16.msra.mxu0 0
    %108 = vmatpush.bf16.msra.mxu0 0
    %109 = vmatpush.bf16.msra.mxu0 0
    %110 = vmatpush.bf16.msra.mxu0 %v97
    %111 = vmatmul.bf16.gmra.mxu0 %v101
    %v112 = vpop.f32.mrf.mxu0
    %v113 = vadd.f32 %v92, %v112
    %v114 = vpop.f32.mrf.mxu0
    %115 = vdwg.mxu0
    %v116 = vmax.f32 %v113, 0.0
    %v117 = vpack.c.bf16 %v116, %v116
    %v118 = vld [vmem:[%s2] sm:$0xf]
    %v119 = vld [vmem:[%s2 + $0x4] sm:$0xf]
    %v120 = vld [vmem:[%s2 + $0x8] sm:$0xf]
    %v121 = vld [vmem:[%s2 + $0xc] sm:$0xf]
    %v122 = vld [vmem:[%s2 + $0x10] sm:$0xf]
    %v123 = vld [vmem:[%s2 + $0x14] sm:$0xf]
    %v124 = vld [vmem:[%s2 + $0x18] sm:$0xf]
    %v125 = vld [vmem:[%s2 + $0x1c] sm:$0xf]
    %v126 = vld [vmem:[%s2 + $0x20] sm:$0xf]
    %v127 = vld [vmem:[%s2 + $0x24] sm:$0xf]
    %v128 = vld [vmem:[%s2 + $0x28] sm:$0xf]
    %v129 = vld [vmem:[%s2 + $0x2c] sm:$0xf]
    %v130 = vld [vmem:[%s2 + $0x30] sm:$0xf]
    %v131 = vld [vmem:[%s2 + $0x34] sm:$0xf]
    %v132 = vld [vmem:[%s2 + $0x38] sm:$0xf]
    %v133 = vld [vmem:[%s2 + $0x3c] sm:$0xf]
    %v134 = vperm.slane %v85, 0
    %v151 = vunpack.c.l.b16 %v118
    %v152 = vunpack.c.l.b16 %v119
    %v153 = vunpack.c.l.b16 %v120
    %v154 = vunpack.c.l.b16 %v121
    %v155 = vunpack.c.l.b16 %v122
    %v156 = vunpack.c.l.b16 %v123
    %v157 = vunpack.c.l.b16 %v124
    %v158 = vunpack.c.l.b16 %v125
    %v159 = vunpack.c.l.b16 %v126
    %v160 = vunpack.c.l.b16 %v127
    %v161 = vunpack.c.l.b16 %v128
    %v162 = vunpack.c.l.b16 %v129
    %v163 = vunpack.c.l.b16 %v130
    %v164 = vunpack.c.l.b16 %v131
    %v165 = vunpack.c.l.b16 %v132
    %v166 = vunpack.c.l.b16 %v133
    %v167 = vpack.c.b16 %v152, %v151
    %v168 = vpack.c.b16 %v154, %v153
    %v169 = vpack.c.b16 %v156, %v155
    %v170 = vpack.c.b16 %v158, %v157
    %v171 = vpack.c.b16 %v160, %v159
    %v172 = vpack.c.b16 %v162, %v161
    %v173 = vpack.c.b16 %v164, %v163
    %v174 = vpack.c.b16 %v166, %v165
    %183 = vmatpush.bf16.msra.mxu0 %v174
    %184 = vmatpush.bf16.msra.mxu0 %v173
    %185 = vmatpush.bf16.msra.mxu0 %v172
    %186 = vmatpush.bf16.msra.mxu0 %v171
    %187 = vmatpush.bf16.msra.mxu0 %v170
    %188 = vmatpush.bf16.msra.mxu0 %v169
    %189 = vmatpush.bf16.msra.mxu0 %v168
    %190 = vmatpush.bf16.msra.mxu0 %v167
    %191 = vmatmul.bf16.gmra.mxu0 %v117
    %v192 = vpop.f32.mrf.mxu0
    %v193 = vadd.f32 %v134, %v192
    %v194 = vpop.f32.mrf.mxu0
    %195 = vdwg.mxu0
    %v196 = vmax.f32 %v193, 0.0
    %v197 = vpack.c.bf16 %v196, %v196
    %v198 = vld [vmem:[#allocation7] sm:$0xf]
    %v199 = vld [vmem:[#allocation7 + $0x4] sm:$0xf]
    %v200 = vld [vmem:[#allocation7 + $0x8] sm:$0xf]
    %v201 = vld [vmem:[#allocation7 + $0xc] sm:$0xf]
    %v202 = vld [vmem:[#allocation7 + $0x10] sm:$0xf]
    %v203 = vld [vmem:[#allocation7 + $0x14] sm:$0xf]
    %v204 = vld [vmem:[#allocation7 + $0x18] sm:$0xf]
    %v205 = vld [vmem:[#allocation7 + $0x1c] sm:$0xf]
    %v206 = vld [vmem:[#allocation7 + $0x20] sm:$0xf]
    %v207 = vld [vmem:[#allocation7 + $0x24] sm:$0xf]
    %v208 = vld [vmem:[#allocation7 + $0x28] sm:$0xf]
    %v209 = vld [vmem:[#allocation7 + $0x2c] sm:$0xf]
    %v210 = vld [vmem:[#allocation7 + $0x30] sm:$0xf]
    %v211 = vld [vmem:[#allocation7 + $0x34] sm:$0xf]
    %v212 = vld [vmem:[#allocation7 + $0x38] sm:$0xf]
    %v213 = vld [vmem:[#allocation7 + $0x3c] sm:$0xf]
    %v214 = vperm.slane %v86, 0
    %v231 = vunpack.c.l.b16 %v198
    %v232 = vunpack.c.l.b16 %v199
    %v233 = vunpack.c.l.b16 %v200
    %v234 = vunpack.c.l.b16 %v201
    %v235 = vunpack.c.l.b16 %v202
    %v236 = vunpack.c.l.b16 %v203
    %v237 = vunpack.c.l.b16 %v204
    %v238 = vunpack.c.l.b16 %v205
    %v239 = vunpack.c.l.b16 %v206
    %v240 = vunpack.c.l.b16 %v207
    %v241 = vunpack.c.l.b16 %v208
    %v242 = vunpack.c.l.b16 %v209
    %v243 = vunpack.c.l.b16 %v210
    %v244 = vunpack.c.l.b16 %v211
    %v245 = vunpack.c.l.b16 %v212
    %v246 = vunpack.c.l.b16 %v213
    %v247 = vpack.c.b16 %v232, %v231
    %v248 = vpack.c.b16 %v234, %v233
    %v249 = vpack.c.b16 %v236, %v235
    %v250 = vpack.c.b16 %v238, %v237
    %v251 = vpack.c.b16 %v240, %v239
    %v252 = vpack.c.b16 %v242, %v241
    %v253 = vpack.c.b16 %v244, %v243
    %v254 = vpack.c.b16 %v246, %v245
    %263 = vmatpush.bf16.msra.mxu0 %v254
    %264 = vmatpush.bf16.msra.mxu0 %v253
    %265 = vmatpush.bf16.msra.mxu0 %v252
    %266 = vmatpush.bf16.msra.mxu0 %v251
    %267 = vmatpush.bf16.msra.mxu0 %v250
    %268 = vmatpush.bf16.msra.mxu0 %v249
    %269 = vmatpush.bf16.msra.mxu0 %v248
    %270 = vmatpush.bf16.msra.mxu0 %v247
    %271 = vmatmul.bf16.gmra.mxu0 %v197
    %v272 = vpop.f32.mrf.mxu0
    %v273 = vadd.f32 %v214, %v272
    %v274 = vpop.f32.mrf.mxu0
    %275 = vdwg.mxu0
    %v276 = vmax.f32 %v273, 0.0
    %v277 = vpack.c.bf16 %v276, %v276
    %v278 = vld [vmem:[%s4] sm:$0xf]
    %v279 = vld [vmem:[%s4 + $0x4] sm:$0xf]
    %v280 = vld [vmem:[%s4 + $0x8] sm:$0xf]
    %v281 = vld [vmem:[%s4 + $0xc] sm:$0xf]
    %v282 = vld [vmem:[%s4 + $0x10] sm:$0xf]
    %v283 = vld [vmem:[%s4 + $0x14] sm:$0xf]
    %v284 = vld [vmem:[%s4 + $0x18] sm:$0xf]
    %v285 = vld [vmem:[%s4 + $0x1c] sm:$0xf]
    %v286 = vld [vmem:[%s4 + $0x20] sm:$0xf]
    %v287 = vld [vmem:[%s4 + $0x24] sm:$0xf]
    %v288 = vld [vmem:[%s4 + $0x28] sm:$0xf]
    %v289 = vld [vmem:[%s4 + $0x2c] sm:$0xf]
    %v290 = vld [vmem:[%s4 + $0x30] sm:$0xf]
    %v291 = vld [vmem:[%s4 + $0x34] sm:$0xf]
    %v292 = vld [vmem:[%s4 + $0x38] sm:$0xf]
    %v293 = vld [vmem:[%s4 + $0x3c] sm:$0xf]
    %v294 = vperm.slane %v87, 0
    %v311 = vunpack.c.l.b16 %v278
    %v312 = vunpack.c.l.b16 %v279
    %v313 = vunpack.c.l.b16 %v280
    %v314 = vunpack.c.l.b16 %v281
    %v315 = vunpack.c.l.b16 %v282
    %v316 = vunpack.c.l.b16 %v283
    %v317 = vunpack.c.l.b16 %v284
    %v318 = vunpack.c.l.b16 %v285
    %v319 = vunpack.c.l.b16 %v286
    %v320 = vunpack.c.l.b16 %v287
    %v321 = vunpack.c.l.b16 %v288
    %v322 = vunpack.c.l.b16 %v289
    %v323 = vunpack.c.l.b16 %v290
    %v324 = vunpack.c.l.b16 %v291
    %v325 = vunpack.c.l.b16 %v292
    %v326 = vunpack.c.l.b16 %v293
    %v327 = vpack.c.b16 %v312, %v311
    %v328 = vpack.c.b16 %v314, %v313
    %v329 = vpack.c.b16 %v316, %v315
    %v330 = vpack.c.b16 %v318, %v317
    %v331 = vpack.c.b16 %v320, %v319
    %v332 = vpack.c.b16 %v322, %v321
    %v333 = vpack.c.b16 %v324, %v323
    %v334 = vpack.c.b16 %v326, %v325
    %343 = vmatpush.bf16.msra.mxu0 %v334
    %344 = vmatpush.bf16.msra.mxu0 %v333
    %345 = vmatpush.bf16.msra.mxu0 %v332
    %346 = vmatpush.bf16.msra.mxu0 %v331
    %347 = vmatpush.bf16.msra.mxu0 %v330
    %348 = vmatpush.bf16.msra.mxu0 %v329
    %349 = vmatpush.bf16.msra.mxu0 %v328
    %350 = vmatpush.bf16.msra.mxu0 %v327
    %351 = vmatmul.bf16.gmra.mxu0 %v277
    %v352 = vpop.f32.mrf.mxu0
    %v353 = vadd.f32 %v294, %v352
    %v354 = vpop.f32.mrf.mxu0
    %355 = vdwg.mxu0
    %vm356 = vcmask 64512
    %357 = vst.msk [vmem:[#allocation10] sm:$0xff] %vm356, %v353
    // Predicated region
    $region42: #{improved_nn_forward.1} parent=1 // pred_check
      _
    $region43: #{improved_nn_forward.1} parent=1 // pred_check_branch
      %359 = sbr.rel (0) target = $region45
    $region44: #{improved_nn_forward.1} parent=1 // pred_region
      %361 = vsyncadd [#allocation4], 0
      %s363 = sshll.u32 [#allocation10], 4
      %s364 = int_to_ptr.vmem [resolvable:$true] %s363
      %s365 = sshll.u32 %s6, 4
      %s366 = int_to_ptr.hbm [resolvable:$true] %s365
      %368 = dma.vmem_to_hbm [thread:$0]  %s364, 128, %s366, [#allocation4]
    $region45: #{improved_nn_forward.1} parent=1 // pred_fallthru
      _
    // Predicated region
    $region46: #{improved_nn_forward.1} parent=1 // pred_check
      _
    $region47: #{improved_nn_forward.1} parent=1 // pred_check_branch
      %370 = sbr.rel (0) target = $region49
    $region48: #{improved_nn_forward.1} parent=1 // pred_region
      %372 = dma.done [#allocation4], 128
    $region49: #{improved_nn_forward.1} parent=1 // pred_fallthru
      _
    %373 = vsyncpa [#allocation3], 1
    %374 = vsyncpa [#allocation6], 1
    %375 = vsyncpa [#allocation9], 1
    %376 = vsyncpa [#allocation4], 1

</llo_original>
